<compile_context>
chip_gen: v7x
topology: tpu7x:2x2x1
jax: 0.10.0
libtpu: 0.0.40
codegen_flags: <defaults>
</compile_context>

<pallas_src>
import jax
import jax.numpy as jnp
from jax.experimental import pallas as pl
from jax.experimental.pallas import tpu as pltpu


def linear_kernel(x_ref, w_ref, b_ref, o_ref):
    # x_ref: (rows, 128) f32 in VMEM; w_ref: (1,) f32 SMEM; b_ref: (1,) f32 SMEM.
    # Elementwise multiply-add on the VPU == x @ W^T + b for a 1x1 weight.
    o_ref[...] = x_ref[...] * w_ref[0] + b_ref[0]


def my_linear_forward(x, weight, bias):
    """x: [N, 1] f32, weight: [1, 1] f32, bias: [1] f32 -> [N, 1] f32."""
    n = x.shape[0]

    # Lane- and sublane-dense repack: pad N to a multiple of 8*128 so the
    # kernel sees whole (8, 128) vreg tiles (last dim fills all 128 lanes,
    # second-last dim fills all 8 sublanes -> unmasked aligned loads/stores).
    tile_elems = 8 * 128
    n_pad = pl.cdiv(n, tile_elems) * tile_elems
    rows = n_pad // 128
    x_flat = x.reshape(n)
    x_dense = jnp.pad(x_flat, (0, n_pad - n)).reshape(rows, 128)

    w_flat = weight.reshape(1)  # 1-D SMEM ref: avoids 2-D SMEM tile padding.

    out_dense = pl.pallas_call(
        linear_kernel,
        out_shape=jax.ShapeDtypeStruct((rows, 128), jnp.float32),
        in_specs=[
            pl.BlockSpec(memory_space=pltpu.VMEM),   # x, full lane-dense block
            pl.BlockSpec(memory_space=pltpu.SMEM),   # weight scalar (1,)
            pl.BlockSpec(memory_space=pltpu.SMEM),   # bias scalar (1,)
        ],
        out_specs=pl.BlockSpec(memory_space=pltpu.VMEM),
    )(x_dense, w_flat, bias)

    # Strip padding and restore the original [N, 1] layout.
    return out_dense.reshape(n_pad, 1)[:n, :]


# Jit the wrapper so the surrounding pad/reshape/slice fuse with the call.
my_linear_forward_jit = jax.jit(my_linear_forward)


if __name__ == "__main__":
    key = jax.random.PRNGKey(0)
    kx, kw, kb = jax.random.split(key, 3)

    # Input consistent with the PyTorch script: x = torch.rand([500, 1])
    x = jax.random.uniform(kx, (500, 1), dtype=jnp.float32)

    # Deterministic param init mimicking nn.Linear(1, 1) default:
    # U(-1/sqrt(in_features), 1/sqrt(in_features)) = U(-1, 1)
    weight = jax.random.uniform(kw, (1, 1), dtype=jnp.float32,
                                minval=-1.0, maxval=1.0)
    bias = jax.random.uniform(kb, (1,), dtype=jnp.float32,
                              minval=-1.0, maxval=1.0)

    out = my_linear_forward_jit(x, weight, bias)
    out = jax.block_until_ready(out)

    # Sanity check against pure-JAX reference of nn.Linear semantics.
    ref = x @ weight.T + bias
    assert out.shape == (500, 1)
    assert jnp.allclose(out, ref, atol=1e-6), "mismatch vs reference"

    print("KERNEL_OK")
</pallas_src>

<mosaic_0001>
module attributes {stable_mosaic.version = 11 : i64} {
  func.func @linear_kernel(%arg0: memref<8x128xf32, #tpu.memory_space<vmem>>, %arg1: memref<1xf32, #tpu.memory_space<smem>>, %arg2: memref<1xf32, #tpu.memory_space<smem>>, %arg3: memref<8x128xf32, #tpu.memory_space<vmem>>) attributes {dimension_semantics = [], scalar_prefetch = 0 : i64, scratch_operands = 0 : i64, tpu.core_type = #tpu.core_type<tc>} {
    %c0 = arith.constant 0 : index
    %c0_0 = arith.constant 0 : index
    %0 = vector.load %arg0[%c0, %c0_0] : memref<8x128xf32, #tpu.memory_space<vmem>>, vector<8x128xf32>
    %c0_1 = arith.constant 0 : index
    %1 = memref.load %arg1[%c0_1] : memref<1xf32, #tpu.memory_space<smem>>
    %2 = vector.broadcast %1 : f32 to vector<8x128xf32>
    %3 = arith.mulf %0, %2 : vector<8x128xf32>
    %c0_2 = arith.constant 0 : index
    %4 = memref.load %arg2[%c0_2] : memref<1xf32, #tpu.memory_space<smem>>
    %5 = vector.broadcast %4 : f32 to vector<8x128xf32>
    %6 = arith.addf %3, %5 : vector<8x128xf32>
    %c0_3 = arith.constant 0 : index
    %c0_4 = arith.constant 0 : index
    %7 = vector.load %arg3[%c0_3, %c0_4] : memref<8x128xf32, #tpu.memory_space<vmem>>, vector<8x128xf32>
    tpu.vector_store %arg3[%c0_3, %c0_4], %6 {strides = array<i32>} : memref<8x128xf32, #tpu.memory_space<vmem>>, vector<8x128xf32>,
    return
  }
}

</mosaic_0001>

<llo_original>
// kernel: my_linear_forward.1
$region0: #{my_linear_forward.1}
  #allocation0 [shape = 'u32[]', space=smem, size = 0x4, offset = 0x4, fixed_abs, tag = 'smem constant byte address 0x4 - core index']
  #allocation1 [shape = 'u32[144,128]{1,0:T(1,128)}', space=vmem, size = 0x12000, scoped, tag = 'internal scratch']
  #allocation2 [shape = 'f32[1]{0:T(128)S(6)}', space=smem, size = 0x200, scoped, tag = 'scoped memory for my_linear_forward.1']
  #allocation3 [shape = 'f32[1]{0:T(128)S(6)}', space=smem, size = 0x200, scoped, tag = 'scoped memory for my_linear_forward.1']
  %s0 = inlined_call_operand.vmem [shape: f32[8,128], index: 0, kind: input, shape index: {}]
  %s1 = inlined_call_operand.<no memory space> [shape: f32[1], index: 1, kind: input, shape index: {}]
  %s2 = inlined_call_operand.<no memory space> [shape: f32[1], index: 2, kind: input, shape index: {}]
  %s3 = inlined_call_operand.vmem [shape: f32[8,128], index: 3, kind: output, shape index: {}]
  %s4 = sld [smem:[#allocation0]]
  $region22: #{my_linear_forward.1} parent=0
    _
  %s6 = ssub.s32 1, %s4
  %s7 = scalar_select 0, %s6, %s4
  %8 = sst [smem:[#allocation2]] %s1
  %9 = sst [smem:[#allocation3]] %s2
  // Predicated region
  $region2: #{my_linear_forward.1} parent=0 // pred_check
    _
  $region3: #{my_linear_forward.1} parent=0 // pred_check_branch
    %11 = sbr.rel (0) target = $region5
  $region4: #{my_linear_forward.1} parent=0 // pred_region
    _
  $region5: #{my_linear_forward.1} parent=0 // pred_fallthru
    _
  // Predicated region
  $region6: #{my_linear_forward.1} parent=0 // pred_check
    _
  $region7: #{my_linear_forward.1} parent=0 // pred_check_branch
    %13 = sbr.rel (0) target = $region9
  $region8: #{my_linear_forward.1} parent=0 // pred_region
    _
  $region9: #{my_linear_forward.1} parent=0 // pred_fallthru
    _
  // Predicated region
  $region10: #{my_linear_forward.1} parent=0 // pred_check
    _
  $region11: #{my_linear_forward.1} parent=0 // pred_check_branch
    %15 = sbr.rel (0) target = $region13
  $region12: #{my_linear_forward.1} parent=0 // pred_region
    _
  $region13: #{my_linear_forward.1} parent=0 // pred_fallthru
    _
  %v16 = vld [vmem:[%s0] sm:$0xff]
  %s17 = sld [smem:[#allocation2]]
  %v18 = vstv %s17
  %v19 = vmul.f32 %v16, %v18
  %s20 = sld [smem:[#allocation3]]
  %v21 = vstv %s20
  %v22 = vadd.f32 %v19, %v21
  %23 = vst [vmem:[%s3] sm:$0xff] %v22
  // Predicated region
  $region14: #{my_linear_forward.1} parent=0 // pred_check
    _
  $region15: #{my_linear_forward.1} parent=0 // pred_check_branch
    %25 = sbr.rel (0) target = $region17
  $region16: #{my_linear_forward.1} parent=0 // pred_region
    _
  $region17: #{my_linear_forward.1} parent=0 // pred_fallthru
    _
  // Predicated region
  $region18: #{my_linear_forward.1} parent=0 // pred_check
    _
  $region19: #{my_linear_forward.1} parent=0 // pred_check_branch
    %27 = sbr.rel (0) target = $region21
  $region20: #{my_linear_forward.1} parent=0 // pred_region
    _
  $region21: #{my_linear_forward.1} parent=0 // pred_fallthru
    _

</llo_original>
